<compile_context>
chip_gen: v6e
topology: v6e:2x2x1
jax: 0.10.0
libtpu: 0.0.40
codegen_flags: <defaults>
</compile_context>

<pallas_src>
import functools

import jax
import jax.numpy as jnp
from jax.experimental import pallas as pl
from jax.experimental.pallas import tpu as pltpu


_BIG = 1e30      # sentinel CE for padded batch rows (always rank last)
_NEG = -1e30     # pad value for padded class columns (exp underflows to 0)


def _round_up(x, m):
    return (x + m - 1) // m * m


# ---------------------------------------------------------------------------
# Phase 1: per-sample cross entropy (batch-tiled, pipelined, lane-dense in C)
# ---------------------------------------------------------------------------
def _ce_kernel(o1_ref, o2_ref, labels_ref, ce1_ref, ce2_ref, *, b_real):
    i = pl.program_id(0)
    tb, c_pad = o1_ref.shape

    labels = labels_ref[...]                                         # (TB, 1) i32
    class_ids = jax.lax.broadcasted_iota(jnp.int32, (tb, c_pad), 1)  # (TB, Cp)
    onehot = class_ids == labels                                     # (TB, Cp)

    def per_sample_ce(o):
        o = o.astype(jnp.float32)
        m = jnp.max(o, axis=1, keepdims=True)                        # (TB, 1)
        # NOTE: on v6e/v7x these lane reductions could be moved onto the MXU
        # (dot with a ones column) if a bundle dump shows XLU saturation; the
        # XLU path is kept since it is also the right choice on v5e.
        lse = m + jnp.log(jnp.sum(jnp.exp(o - m), axis=1, keepdims=True))
        picked = jnp.sum(jnp.where(onehot, o, 0.0), axis=1, keepdims=True)
        return lse - picked                                          # (TB, 1)

    # padded batch rows -> huge CE so they always rank last / are never kept
    row_ids = i * tb + jax.lax.broadcasted_iota(jnp.int32, (tb, 1), 0)
    valid = row_ids < b_real
    ce1_ref[...] = jnp.where(valid, per_sample_ce(o1_ref[...]), _BIG)
    ce2_ref[...] = jnp.where(valid, per_sample_ce(o2_ref[...]), _BIG)


# ---------------------------------------------------------------------------
# Phase 2: stable rank counting + co-teaching selection (batch-tiled)
# ---------------------------------------------------------------------------
def _rank_select_kernel(ce1c_ref, ce2c_ref, ce1r_ref, ce2r_ref,
                        out1_ref, out2_ref, *, rem_num):
    i = pl.program_id(0)
    tb = ce1c_ref.shape[0]
    b_pad = ce1r_ref.shape[1]

    @pl.when(i == 0)
    def _init():
        out1_ref[...] = jnp.zeros_like(out1_ref)
        out2_ref[...] = jnp.zeros_like(out2_ref)

    ce1_col = ce1c_ref[...]           # (TB, 1)  CE of this batch tile
    ce2_col = ce2c_ref[...]
    ce1_row = ce1r_ref[...]           # (1, Bp)  CE of the whole batch, lane-major
    ce2_row = ce2r_ref[...]

    row_ids = i * tb + jax.lax.broadcasted_iota(jnp.int32, (tb, 1), 0)  # global i
    col_ids = jax.lax.broadcasted_iota(jnp.int32, (tb, b_pad), 1)       # global j

    def rank(ce_row, ce_col):
        # Stable ascending-argsort position, single fused comparison pass:
        #   rank_i = #{ j : ce_j < ce_i  or  (ce_j == ce_i and j < i) }
        cmp = (ce_row < ce_col) | ((ce_row == ce_col) & (col_ids < row_ids))
        return jnp.sum(cmp.astype(jnp.int32), axis=1, keepdims=True)    # (TB,1) i32

    rank1 = rank(ce1_row, ce1_col)
    rank2 = rank(ce2_row, ce2_col)

    # keep the samples with the smallest CE of the *other* network
    sel1 = jnp.where(rank2 < rem_num, ce1_col, 0.0)
    sel2 = jnp.where(rank1 < rem_num, ce2_col, 0.0)

    out1_ref[...] += jnp.sum(sel1, axis=0, keepdims=True)               # (1, 1)
    out2_ref[...] += jnp.sum(sel2, axis=0, keepdims=True)

    @pl.when(i == pl.num_programs(0) - 1)
    def _finalize():
        inv = jnp.float32(1.0 / rem_num if rem_num > 0 else 0.0)
        out1_ref[...] *= inv
        out2_ref[...] *= inv


def coteaching_resnet_loss(o1, o2, labels, noise_rate=0.1):
    """Returns (loss1, loss2) exactly as CoTeachingResnetLoss.forward."""
    B, C = o1.shape
    rem_num = int(B * (1.0 - noise_rate))

    # ---- host-side padding: classes to a lane multiple, batch to a tile ----
    C_pad = _round_up(C, 128)
    if B <= 128:
        B_pad = _round_up(B, 8)
        TB = B_pad
    else:
        B_pad = _round_up(B, 128)
        TB = 128
    nb = B_pad // TB

    def pad_logits(o):
        o = o.astype(jnp.float32)
        o = jnp.pad(o, ((0, 0), (0, C_pad - C)), constant_values=_NEG)
        return jnp.pad(o, ((0, B_pad - B), (0, 0)), constant_values=0.0)

    o1_p = pad_logits(o1)
    o2_p = pad_logits(o2)
    labels_p = jnp.pad(labels.astype(jnp.int32), (0, B_pad - B)).reshape(B_pad, 1)

    # ---------------- phase 1: per-sample CE (pipelined over batch) ---------
    ce_kernel = functools.partial(_ce_kernel, b_real=B)
    ce1, ce2 = pl.pallas_call(
        ce_kernel,
        grid=(nb,),
        in_specs=[
            pl.BlockSpec((TB, C_pad), lambda i: (i, 0)),
            pl.BlockSpec((TB, C_pad), lambda i: (i, 0)),
            pl.BlockSpec((TB, 1), lambda i: (i, 0)),
        ],
        out_specs=[
            pl.BlockSpec((TB, 1), lambda i: (i, 0)),
            pl.BlockSpec((TB, 1), lambda i: (i, 0)),
        ],
        out_shape=[
            jax.ShapeDtypeStruct((B_pad, 1), jnp.float32),
            jax.ShapeDtypeStruct((B_pad, 1), jnp.float32),
        ],
        compiler_params=pltpu.CompilerParams(
            dimension_semantics=("parallel",),
            vmem_limit_bytes=32 * 1024 * 1024,
        ),
        cost_estimate=pl.CostEstimate(
            flops=10 * B_pad * C_pad,
            transcendentals=2 * B_pad * C_pad,
            bytes_accessed=8 * B_pad * C_pad + 12 * B_pad,
        ),
    )(o1_p, o2_p, labels_p)

    # lane-major view of the CE vectors for the rank comparisons (only B floats)
    ce1_row = ce1.reshape(1, B_pad)
    ce2_row = ce2.reshape(1, B_pad)

    # ---------------- phase 2: rank + co-teaching selection -----------------
    rs_kernel = functools.partial(_rank_select_kernel, rem_num=rem_num)
    out1, out2 = pl.pallas_call(
        rs_kernel,
        grid=(nb,),
        in_specs=[
            pl.BlockSpec((TB, 1), lambda i: (i, 0)),
            pl.BlockSpec((TB, 1), lambda i: (i, 0)),
            pl.BlockSpec((1, B_pad), lambda i: (0, 0)),
            pl.BlockSpec((1, B_pad), lambda i: (0, 0)),
        ],
        out_specs=[
            pl.BlockSpec((1, 1), lambda i: (0, 0)),
            pl.BlockSpec((1, 1), lambda i: (0, 0)),
        ],
        out_shape=[
            jax.ShapeDtypeStruct((1, 1), jnp.float32),
            jax.ShapeDtypeStruct((1, 1), jnp.float32),
        ],
        compiler_params=pltpu.CompilerParams(
            dimension_semantics=("arbitrary",),   # outputs are accumulators
            vmem_limit_bytes=32 * 1024 * 1024,
        ),
        cost_estimate=pl.CostEstimate(
            flops=8 * B_pad * B_pad,
            transcendentals=0,
            bytes_accessed=4 * B_pad * (2 + 2 * nb) + 8,
        ),
    )(ce1, ce2, ce1_row, ce2_row)

    return out1[0, 0], out2[0, 0]


def _reference(o1, o2, labels, noise_rate=0.1):
    # pure-JAX reference (mirrors the PyTorch forward)
    def ce(o):
        o = o.astype(jnp.float32)
        lse = jax.nn.logsumexp(o, axis=1)
        picked = jnp.take_along_axis(o, labels[:, None], axis=1)[:, 0]
        return lse - picked

    ce1, ce2 = ce(o1), ce(o2)
    rem_num = int(o1.shape[0] * (1.0 - noise_rate))
    idx1 = jnp.argsort(ce1)
    idx2 = jnp.argsort(ce2)
    return ce1[idx2[:rem_num]].mean(), ce2[idx1[:rem_num]].mean()


if __name__ == "__main__":
    key = jax.random.PRNGKey(0)

    # small, module-consistent shapes: logits [B, C], labels [B]
    # second case exercises batch/class padding (non-multiples of 8 / 128)
    for (B, C, noise) in [(8, 32, 0.1), (20, 200, 0.25)]:
        k1, k2, k3, key = jax.random.split(key, 4)
        o1 = jax.random.normal(k1, (B, C), dtype=jnp.float32)
        o2 = jax.random.normal(k2, (B, C), dtype=jnp.float32)
        labels = jax.random.randint(k3, (B,), 0, C, dtype=jnp.int32)

        l1, l2 = coteaching_resnet_loss(o1, o2, labels, noise_rate=noise)
        jax.block_until_ready((l1, l2))

        r1, r2 = _reference(o1, o2, labels, noise_rate=noise)
        assert jnp.allclose(l1, r1, rtol=1e-5, atol=1e-5), (B, C, l1, r1)
        assert jnp.allclose(l2, r2, rtol=1e-5, atol=1e-5), (B, C, l2, r2)

    print("KERNEL_OK")
</pallas_src>

<mosaic_0001>
module attributes {stable_mosaic.version = 11 : i64} {
  func.func @_ce_kernel(%arg0: i32, %arg1: memref<8x128xf32, #tpu.memory_space<vmem>>, %arg2: memref<8x128xf32, #tpu.memory_space<vmem>>, %arg3: memref<8x1xi32, #tpu.memory_space<vmem>>, %arg4: memref<8x1xf32, #tpu.memory_space<vmem>>, %arg5: memref<8x1xf32, #tpu.memory_space<vmem>>) attributes {dimension_semantics = [#tpu.dimension_semantics<parallel>], iteration_bounds = array<i64: 1>, scalar_prefetch = 0 : i64, scratch_operands = 0 : i64, tpu.core_type = #tpu.core_type<tc>, window_params = [{transform_indices = @transform_0, window_bounds = array<i64: 8, 128>}, {transform_indices = @transform_1, window_bounds = array<i64: 8, 128>}, {transform_indices = @transform_2, window_bounds = array<i64: 8, 1>}, {transform_indices = @transform_3, window_bounds = array<i64: 8, 1>}, {transform_indices = @transform_4, window_bounds = array<i64: 8, 1>}]} {
    %c0 = arith.constant 0 : index
    %c0_0 = arith.constant 0 : index
    %0 = vector.load %arg3[%c0, %c0_0] : memref<8x1xi32, #tpu.memory_space<vmem>>, vector<8x1xi32>
    %1 = tpu.iota {dimensions = array<i32: 1>} : vector<8x128xi32>
    %2 = vector.broadcast %0 : vector<8x1xi32> to vector<8x128xi32>
    %3 = arith.cmpi eq, %1, %2 : vector<8x128xi32>
    %c8_i32 = arith.constant 8 : i32
    %4 = arith.muli %arg0, %c8_i32 : i32
    %5 = tpu.iota {dimensions = array<i32: 0>} : vector<8x1xi32>
    %6 = vector.broadcast %4 : i32 to vector<8x1xi32>
    %7 = arith.addi %6, %5 : vector<8x1xi32>
    %c8_i32_1 = arith.constant 8 : i32
    %8 = vector.broadcast %c8_i32_1 : i32 to vector<8x1xi32>
    %9 = arith.cmpi slt, %7, %8 : vector<8x1xi32>
    %c0_2 = arith.constant 0 : index
    %c0_3 = arith.constant 0 : index
    %10 = vector.load %arg1[%c0_2, %c0_3] : memref<8x128xf32, #tpu.memory_space<vmem>>, vector<8x128xf32>
    %cst = arith.constant dense<0xFF800000> : vector<8xf32>
    %11 = vector.multi_reduction <maximumf>, %10, %cst [1] : vector<8x128xf32> to vector<8xf32>
    %12 = vector.shape_cast %11 : vector<8xf32> to vector<8x1xf32>
    %13 = vector.broadcast %12 : vector<8x1xf32> to vector<8x128xf32>
    %14 = arith.subf %10, %13 : vector<8x128xf32>
    %15 = math.exp %14 : vector<8x128xf32>
    %cst_4 = arith.constant dense<0.000000e+00> : vector<8xf32>
    %16 = vector.multi_reduction <add>, %15, %cst_4 [1] : vector<8x128xf32> to vector<8xf32>
    %17 = vector.shape_cast %16 : vector<8xf32> to vector<8x1xf32>
    %18 = math.log %17 : vector<8x1xf32>
    %19 = arith.addf %12, %18 : vector<8x1xf32>
    %cst_5 = arith.constant 0.000000e+00 : f32
    %20 = vector.broadcast %cst_5 : f32 to vector<8x128xf32>
    %21 = arith.select %3, %10, %20 : vector<8x128xi1>, vector<8x128xf32>
    %cst_6 = arith.constant dense<0.000000e+00> : vector<8xf32>
    %22 = vector.multi_reduction <add>, %21, %cst_6 [1] : vector<8x128xf32> to vector<8xf32>
    %23 = vector.shape_cast %22 : vector<8xf32> to vector<8x1xf32>
    %24 = arith.subf %19, %23 : vector<8x1xf32>
    %cst_7 = arith.constant 1.000000e+30 : f32
    %25 = vector.broadcast %cst_7 : f32 to vector<8x1xf32>
    %26 = arith.select %9, %24, %25 : vector<8x1xi1>, vector<8x1xf32>
    %c0_8 = arith.constant 0 : index
    %c0_9 = arith.constant 0 : index
    %27 = vector.load %arg4[%c0_8, %c0_9] : memref<8x1xf32, #tpu.memory_space<vmem>>, vector<8x1xf32>
    tpu.vector_store %arg4[%c0_8, %c0_9], %26 {strides = array<i32>} : memref<8x1xf32, #tpu.memory_space<vmem>>, vector<8x1xf32>,
    %c0_10 = arith.constant 0 : index
    %c0_11 = arith.constant 0 : index
    %28 = vector.load %arg2[%c0_10, %c0_11] : memref<8x128xf32, #tpu.memory_space<vmem>>, vector<8x128xf32>
    %cst_12 = arith.constant dense<0xFF800000> : vector<8xf32>
    %29 = vector.multi_reduction <maximumf>, %28, %cst_12 [1] : vector<8x128xf32> to vector<8xf32>
    %30 = vector.shape_cast %29 : vector<8xf32> to vector<8x1xf32>
    %31 = vector.broadcast %30 : vector<8x1xf32> to vector<8x128xf32>
    %32 = arith.subf %28, %31 : vector<8x128xf32>
    %33 = math.exp %32 : vector<8x128xf32>
    %cst_13 = arith.constant dense<0.000000e+00> : vector<8xf32>
    %34 = vector.multi_reduction <add>, %33, %cst_13 [1] : vector<8x128xf32> to vector<8xf32>
    %35 = vector.shape_cast %34 : vector<8xf32> to vector<8x1xf32>
    %36 = math.log %35 : vector<8x1xf32>
    %37 = arith.addf %30, %36 : vector<8x1xf32>
    %cst_14 = arith.constant 0.000000e+00 : f32
    %38 = vector.broadcast %cst_14 : f32 to vector<8x128xf32>
    %39 = arith.select %3, %28, %38 : vector<8x128xi1>, vector<8x128xf32>
    %cst_15 = arith.constant dense<0.000000e+00> : vector<8xf32>
    %40 = vector.multi_reduction <add>, %39, %cst_15 [1] : vector<8x128xf32> to vector<8xf32>
    %41 = vector.shape_cast %40 : vector<8xf32> to vector<8x1xf32>
    %42 = arith.subf %37, %41 : vector<8x1xf32>
    %cst_16 = arith.constant 1.000000e+30 : f32
    %43 = vector.broadcast %cst_16 : f32 to vector<8x1xf32>
    %44 = arith.select %9, %42, %43 : vector<8x1xi1>, vector<8x1xf32>
    %c0_17 = arith.constant 0 : index
    %c0_18 = arith.constant 0 : index
    %45 = vector.load %arg5[%c0_17, %c0_18] : memref<8x1xf32, #tpu.memory_space<vmem>>, vector<8x1xf32>
    tpu.vector_store %arg5[%c0_17, %c0_18], %44 {strides = array<i32>} : memref<8x1xf32, #tpu.memory_space<vmem>>, vector<8x1xf32>,
    return
  }
  func.func @transform_0(%arg0: i32) -> (i32, i32) {
    %c0_i32 = arith.constant 0 : i32
    %c0_i32_0 = arith.constant 0 : i32
    return %arg0, %c0_i32 : i32, i32
  }
  func.func @transform_1(%arg0: i32) -> (i32, i32) {
    %c0_i32 = arith.constant 0 : i32
    %c0_i32_0 = arith.constant 0 : i32
    return %arg0, %c0_i32 : i32, i32
  }
  func.func @transform_2(%arg0: i32) -> (i32, i32) {
    %c0_i32 = arith.constant 0 : i32
    %c0_i32_0 = arith.constant 0 : i32
    return %arg0, %c0_i32 : i32, i32
  }
  func.func @transform_3(%arg0: i32) -> (i32, i32) {
    %c0_i32 = arith.constant 0 : i32
    %c0_i32_0 = arith.constant 0 : i32
    return %arg0, %c0_i32 : i32, i32
  }
  func.func @transform_4(%arg0: i32) -> (i32, i32) {
    %c0_i32 = arith.constant 0 : i32
    %c0_i32_0 = arith.constant 0 : i32
    return %arg0, %c0_i32 : i32, i32
  }
}

</mosaic_0001>

<llo_original>
// kernel: tpu_custom_call.1
$region0: #{tpu_custom_call.1}
  #allocation0 [shape = 'u32[]', space=smem, size = 0x4, offset = 0x4, fixed_abs, tag = 'smem constant byte address 0x4 - core index']
  #allocation1 [shape = 'u32[144,128]{1,0:T(1,128)}', space=vmem, size = 0x12000, scoped, tag = 'internal scratch']
  %s0 = inlined_call_operand.vmem [shape: f32[8,128], index: 0, kind: input, shape index: {}]
  %s1 = inlined_call_operand.hbm [shape: f32[8,128], index: 1, kind: input, shape index: {}]
  %s2 = inlined_call_operand.vmem [shape: s32[8,1], index: 2, kind: input, shape index: {}]
  %s3 = inlined_call_operand.vmem [shape: f32[8,1], index: 3, kind: output, shape index: {0}]
  %s4 = inlined_call_operand.vmem [shape: f32[8,1], index: 4, kind: output, shape index: {1}]
  %5 = xla_tuple %s3, %s4
  %s6 = sld [smem:[#allocation0]]
  $region34: #{tpu_custom_call.1} parent=0
    _
  %s8 = ssub.s32 1, %s6
  %s9 = scalar_select 0, %s8, %s6
  $region1: #{tpu_custom_call.1} parent=0
    #allocation2 [shape = 'u8[4096]{0}', space=vmem, size = 0x1000, scoped, tag = 'input window, operand 1, single buffered']
    #allocation3 [shape = 's32[1]{0}', space=sflag, size = 0x4, scoped, tag = 'scoped memory for tpu_custom_call.1']
    %10 = vsyncpa [#allocation3], 0
    // Predicated region
    $region2: #{tpu_custom_call.1} parent=1 // pred_check
      _
    $region3: #{tpu_custom_call.1} parent=1 // pred_check_branch
      %12 = sbr.rel (0) target = $region5
    $region4: #{tpu_custom_call.1} parent=1 // pred_region
      _
    $region5: #{tpu_custom_call.1} parent=1 // pred_fallthru
      _
    // Predicated region
    $region6: #{tpu_custom_call.1} parent=1 // pred_check
      _
    $region7: #{tpu_custom_call.1} parent=1 // pred_check_branch
      %14 = sbr.rel (0) target = $region9
    $region8: #{tpu_custom_call.1} parent=1 // pred_region
      %s16 = ssub.s32 128, 128
      %17 = vsyncadd [#allocation3], %s16
      %s19 = sshll.u32 [#allocation2], 4
      %s20 = int_to_ptr.vmem [resolvable:$true] %s19
      %22 = dma.hbm_to_vmem [thread:$0]  %s1, 128, %s20, [#allocation3]
    $region9: #{tpu_custom_call.1} parent=1 // pred_fallthru
      _
    // Predicated region
    $region10: #{tpu_custom_call.1} parent=1 // pred_check
      _
    $region11: #{tpu_custom_call.1} parent=1 // pred_check_branch
      %24 = sbr.rel (0) target = $region13
    $region12: #{tpu_custom_call.1} parent=1 // pred_region
      _
    $region13: #{tpu_custom_call.1} parent=1 // pred_fallthru
      _
    // Predicated region
    $region14: #{tpu_custom_call.1} parent=1 // pred_check
      _
    $region15: #{tpu_custom_call.1} parent=1 // pred_check_branch
      %26 = sbr.rel (0) target = $region17
    $region16: #{tpu_custom_call.1} parent=1 // pred_region
      %27 = dma.done [#allocation3], 128
    $region17: #{tpu_custom_call.1} parent=1 // pred_fallthru
      _
    %v28 = vld [vmem:[%s2] sm:$0xff]
    %v29 = vlaneseq
    %v30 = vand.u32 %v29, 127
    %31 = vset.pattern.permute.xlu0 0
    %32 = vperm.xlu0 %31, %v28
    %v33 = vpop.permute.xlu0 %32
    %vm34 = vcmp.eq.s32.totalorder %v30, %v33
    %s35 = smul.u32 0, 8
    %v36 = vlaneseq
    %v37 = vshrl.u32 %v36, 7
    %v38 = vstv %s35
    %v39 = vadd.s32 %v38, %v37
    %vm40 = vcmp.lt.s32.totalorder %v39, 8
    %v41 = vld [vmem:[%s0] sm:$0xff]
    %42 = vmax.xlane.f32.xlu0 %v41
    %v43 = vpop.xlane.xlu0 %42
    %v44 = vsub.f32 %v41, %v43
    %v45 = vmul.f32 %v44, 1.442695
    %v46 = vpow.pop %v45
    %47 = vadd.xlane.f32.xlu0 %v46
    %v48 = vpop.xlane.xlu0 %47
    %v49 = vlog2.pop %v48
    %v50 = vmul.f32 %v49, 0.6931472
    %v51 = vadd.f32 %v43, %v50
    %v52 = vsel %vm34, %v41, 0.0
    %53 = vadd.xlane.f32.xlu0 %v52
    %v54 = vpop.xlane.xlu0 %53
    %v55 = vsub.f32 %v51, %v54
    %v56 = vsel %vm40, %v55, 1e+30
    %vm57 = vcmask 7168
    %58 = vst.msk [vmem:[%s3] sm:$0xff] %vm57, %v56
    %v59 = vld [vmem:[#allocation2] sm:$0xff]
    %60 = vmax.xlane.f32.xlu0 %v59
    %v61 = vpop.xlane.xlu0 %60
    %v62 = vsub.f32 %v59, %v61
    %v63 = vmul.f32 %v62, 1.442695
    %v64 = vpow.pop %v63
    %65 = vadd.xlane.f32.xlu0 %v64
    %v66 = vpop.xlane.xlu0 %65
    %v67 = vlog2.pop %v66
    %v68 = vmul.f32 %v67, 0.6931472
    %v69 = vadd.f32 %v61, %v68
    %v70 = vsel %vm34, %v59, 0.0
    %71 = vadd.xlane.f32.xlu0 %v70
    %v72 = vpop.xlane.xlu0 %71
    %v73 = vsub.f32 %v69, %v72
    %v74 = vsel %vm40, %v73, 1e+30
    %75 = vst.msk [vmem:[%s4] sm:$0xff] %vm57, %v74
    // Predicated region
    $region18: #{tpu_custom_call.1} parent=1 // pred_check
      _
    $region19: #{tpu_custom_call.1} parent=1 // pred_check_branch
      %77 = sbr.rel (0) target = $region21
    $region20: #{tpu_custom_call.1} parent=1 // pred_region
      _
    $region21: #{tpu_custom_call.1} parent=1 // pred_fallthru
      _
    // Predicated region
    $region22: #{tpu_custom_call.1} parent=1 // pred_check
      _
    $region23: #{tpu_custom_call.1} parent=1 // pred_check_branch
      %79 = sbr.rel (0) target = $region25
    $region24: #{tpu_custom_call.1} parent=1 // pred_region
      _
    $region25: #{tpu_custom_call.1} parent=1 // pred_fallthru
      _
    // Predicated region
    $region26: #{tpu_custom_call.1} parent=1 // pred_check
      _
    $region27: #{tpu_custom_call.1} parent=1 // pred_check_branch
      %81 = sbr.rel (0) target = $region29
    $region28: #{tpu_custom_call.1} parent=1 // pred_region
      _
    $region29: #{tpu_custom_call.1} parent=1 // pred_fallthru
      _
    // Predicated region
    $region30: #{tpu_custom_call.1} parent=1 // pred_check
      _
    $region31: #{tpu_custom_call.1} parent=1 // pred_check_branch
      %83 = sbr.rel (0) target = $region33
    $region32: #{tpu_custom_call.1} parent=1 // pred_region
      _
    $region33: #{tpu_custom_call.1} parent=1 // pred_fallthru
      _
    %84 = vsyncpa [#allocation3], 1

</llo_original>
